<compile_context>
chip_gen: v6e
topology: v6e:2x2x1
jax: 0.10.0
libtpu: 0.0.40
codegen_flags: <defaults>
</compile_context>

<pallas_src>
import functools

import jax
import jax.numpy as jnp
from jax import lax
from jax.experimental import pallas as pl
from jax.experimental.pallas import tpu as pltpu


def _round_up(n, m):
    return ((n + m - 1) // m) * m


def _vmem_limit_bytes():
    """~75% of physical per-core VMEM (48 MiB v7x, 96 MiB v5e/v6e); safe 48 MiB fallback."""
    try:
        cap = int(pltpu.get_tpu_info().vmem_capacity_bytes)
        if cap > 0:
            return (cap * 3) // 4
    except Exception:
        pass
    return 48 * 1024 * 1024


def _pick_tiles(T, D, E, imax, vmem_limit):
    """Pick (token_tile, intermediate_chunk) under the scoped-VMEM budget."""
    # Intermediate chunk: largest lane-aligned chunk whose double-buffered bf16 weight
    # blocks (w13: D x 2ic, w2: ic x D) stay under ~40% of the scoped limit.
    cands = sorted({c for c in (imax, 1024, 512, 256, 128) if c <= imax and imax % c == 0},
                   reverse=True)
    ic = cands[-1]
    for c in cands:
        if 12 * D * c <= 0.4 * vmem_limit:      # 2 bufs * (D*2c + c*D) * 2 B
            ic = c
            break
    # Token tile: largest (<=2048) tile whose token-proportional buffers fit the remainder.
    weight_bytes = 12 * D * ic
    per_tok = 12 * D + 8 * (E + 1)              # x bf16 2buf + out f32 2buf + cw f32 2buf
    budget = int(0.8 * vmem_limit) - weight_bytes
    tt_cap = max(16, min(2048, budget // per_tok))
    if tt_cap >= 256:
        tt_cap = (tt_cap // 256) * 256          # full MXU M on v6e/v7x
    else:
        tt_cap = (tt_cap // 16) * 16            # bf16 sublane pack
    tt = max(16, min(_round_up(T, 16), tt_cap))
    return tt, ic


def _moe_kernel(wid_ref, cnt_ref, x_ref, cw_ref, w13_ref, w2_ref, out_ref,
                *, ic, fold_cw_into_up):
    """Grid = (token_tiles, E + 1, n_ic); expert slot 0 is the shared FFN.

    wid_ref : SMEM (E+1, nT) int32   weight slot to fetch (clamped to last active expert)
    cnt_ref : SMEM (E+1, nT) int32   routed-token count per (expert, token tile)
    x_ref   : VMEM (Tt, D)      bf16 token tile
    cw_ref  : VMEM (E+1, Tt, 1) f32  combine weights for this tile (slot 0 == 1.0)
    w13_ref : VMEM (1,1,D,2*ic) bf16 fused + pre-transposed gate|up chunk
    w2_ref  : VMEM (1,1,ic,D)   bf16 pre-transposed down chunk
    out_ref : VMEM (Tt, D)      f32  resident accumulator over (expert, chunk) axes
    """
    t = pl.program_id(0)
    e = pl.program_id(1)
    c = pl.program_id(2)
    first = jnp.logical_and(e == 0, c == 0)     # shared expert, first chunk: direct store

    # Skip experts with no routed tokens in this tile (their combine weights are zero).
    @pl.when(cnt_ref[e, t] > 0)
    def _():
        x = x_ref[...]                                                       # (Tt, D) bf16
        # Fused gate|up projection for this intermediate chunk: one MXU matmul, f32 acc.
        h = jnp.dot(x, w13_ref[0, 0], preferred_element_type=jnp.float32)    # (Tt, 2*ic)
        g = jax.nn.silu(h[:, :ic]) * h[:, ic:]                               # (Tt, ic) f32
        cw = cw_ref[e]                                                       # (Tt, 1)  f32
        if fold_cw_into_up:
            down = jnp.dot((g * cw).astype(jnp.bfloat16), w2_ref[0, 0],
                           preferred_element_type=jnp.float32)               # (Tt, D)
        else:
            down = cw * jnp.dot(g.astype(jnp.bfloat16), w2_ref[0, 0],
                                preferred_element_type=jnp.float32)          # (Tt, D)

        @pl.when(first)
        def _():
            out_ref[...] = down

        @pl.when(jnp.logical_not(first))
        def _():
            out_ref[...] += down


@functools.partial(jax.jit, static_argnames=("num_experts", "router_topk"))
def moe_feed_forward(x, gate_w, w1, w3, w2, sw1, sw3, sw2,
                     *, num_experts, router_topk):
    """x: (T, D) f32. Returns (T, D) f32 = routed-MoE(x) + shared-FFN(x)."""
    T, D = x.shape
    E, I, _ = w1.shape
    SI = sw1.shape[0]
    imax = _round_up(max(I, SI), 128)           # lane-tile aligned intermediate dim

    # ---- gating (plain JAX, f32 -> routing weights identical to the reference) ----
    logits = jnp.dot(x, gate_w.T)                                     # (T, E)
    topk_vals, topk_idx = lax.top_k(logits, router_topk)              # (T, A)
    probs = jax.nn.softmax(topk_vals, axis=-1)                        # (T, A)
    one_hot = jax.nn.one_hot(topk_idx, num_experts, dtype=jnp.float32)
    cw = jnp.einsum('tae,ta->te', one_hot, probs)                     # (T, E) dense combine wts
    routed = jnp.sum(one_hot, axis=1)                                 # (T, E) 0/1 routed flags

    # ---- generation-aware tiling ----
    vmem_limit = _vmem_limit_bytes()
    tt, ic = _pick_tiles(T, D, E, imax, vmem_limit)
    n_ic = imax // ic
    t_pad = _round_up(T, tt)
    n_t = t_pad // tt

    # ---- weight prep: pre-transpose (contract lhs-last x rhs-first), fuse w1|w3, pad the
    #      intermediate dim to imax, chunk it, shared FFN as slot 0, bf16 ----
    def pad_i(a):   # pad last (intermediate) axis to imax
        return jnp.pad(a, [(0, 0)] * (a.ndim - 1) + [(0, imax - a.shape[-1])])

    w1t = pad_i(jnp.transpose(w1, (0, 2, 1)))                  # (E, D, imax)
    w3t = pad_i(jnp.transpose(w3, (0, 2, 1)))
    s1t = pad_i(sw1.T)[None]                                   # (1, D, imax)
    s3t = pad_i(sw3.T)[None]
    wg = jnp.concatenate([s1t, w1t], axis=0)                   # (E+1, D, imax) shared first
    wu = jnp.concatenate([s3t, w3t], axis=0)
    wg = jnp.transpose(wg.reshape(E + 1, D, n_ic, ic), (0, 2, 1, 3))   # (E+1, n_ic, D, ic)
    wu = jnp.transpose(wu.reshape(E + 1, D, n_ic, ic), (0, 2, 1, 3))
    w13_all = jnp.concatenate([wg, wu], axis=-1).astype(jnp.bfloat16)  # (E+1, n_ic, D, 2*ic)

    w2t = jnp.transpose(w2, (0, 2, 1))                         # (E, I, D)
    w2t = jnp.pad(w2t, ((0, 0), (0, imax - I), (0, 0)))        # (E, imax, D)
    s2t = jnp.pad(sw2.T, ((0, imax - SI), (0, 0)))[None]       # (1, imax, D)
    w2_all = jnp.concatenate([s2t, w2t], axis=0)               # (E+1, imax, D)
    w2_all = w2_all.reshape(E + 1, n_ic, ic, D).astype(jnp.bfloat16)   # (E+1, n_ic, ic, D)

    # ---- combine weights: shared slot 0 == 1.0; coalesced per-tile (E+1, tt, 1) block ----
    cw_all = jnp.concatenate([jnp.ones((T, 1), cw.dtype), cw], axis=-1)   # (T, E+1)
    cw_p = jnp.pad(cw_all, ((0, t_pad - T), (0, 0)))
    cw_etl = jnp.transpose(cw_p)[:, :, None]                              # (E+1, Tp, 1)

    # ---- token tile + bf16 cast ----
    x_p = jnp.pad(x, ((0, t_pad - T), (0, 0))).astype(jnp.bfloat16)       # (Tp, D)

    # ---- per-(tile, expert) routed counts and DMA-dedupe weight ids (scalar prefetch) ----
    routed_p = jnp.pad(routed, ((0, t_pad - T), (0, 0)))
    tile_counts = jnp.sum(routed_p.reshape(n_t, tt, E), axis=1).astype(jnp.int32)   # (n_t, E)
    counts = jnp.concatenate(
        [jnp.full((n_t, 1), tt, jnp.int32), tile_counts], axis=1)                   # (n_t, E+1)
    active = counts > 0
    slot_ids = jnp.broadcast_to(jnp.arange(E + 1, dtype=jnp.int32), (n_t, E + 1))
    wid = lax.cummax(jnp.where(active, slot_ids, -1), axis=1).astype(jnp.int32)     # (n_t, E+1)
    counts_smem = counts.T          # (E+1, n_t): short axis first -> small SMEM footprint
    wid_smem = wid.T

    # ---- grid: token tiles (parallel) x experts+shared x intermediate chunks ----
    grid = (n_t, E + 1, n_ic)

    def x_map(t, e, c, wid_ref, cnt_ref):
        return (t, 0)

    def cw_map(t, e, c, wid_ref, cnt_ref):
        return (0, t, 0)

    def w_map(t, e, c, wid_ref, cnt_ref):
        # Skipped experts return the previously fetched block index -> DMA is deduped.
        act = cnt_ref[e, t] > 0
        return (wid_ref[e, t], jnp.where(act, c, n_ic - 1), 0, 0)

    def out_map(t, e, c, wid_ref, cnt_ref):
        return (t, 0)

    grid_spec = pltpu.PrefetchScalarGridSpec(
        num_scalar_prefetch=2,                                            # wid, counts -> SMEM
        grid=grid,
        in_specs=[
            pl.BlockSpec((tt, D), x_map),                                 # x tile (once/tile)
            pl.BlockSpec((E + 1, tt, 1), cw_map),                         # all combine wts/tile
            pl.BlockSpec((1, 1, D, 2 * ic), w_map),                       # fused w1|w3 chunk
            pl.BlockSpec((1, 1, ic, D), w_map),                           # w2 chunk
        ],
        out_specs=pl.BlockSpec((tt, D), out_map),                         # resident f32 acc
    )

    out = pl.pallas_call(
        functools.partial(_moe_kernel, ic=ic, fold_cw_into_up=(ic <= D)),
        out_shape=jax.ShapeDtypeStruct((t_pad, D), jnp.float32),
        grid_spec=grid_spec,
        compiler_params=pltpu.CompilerParams(
            dimension_semantics=("parallel", "arbitrary", "arbitrary"),
            vmem_limit_bytes=vmem_limit),
    )(wid_smem, counts_smem, x_p, cw_etl, w13_all, w2_all)

    return out[:T]


def _reference(x, gate_w, w1, w3, w2, sw1, sw3, sw2, *, router_topk):
    """Pure-JAX f32 port of the PyTorch forward (use_token_dispatcher=False)."""
    logits = jnp.dot(x, gate_w.T)
    topk_vals, topk_idx = lax.top_k(logits, router_topk)
    probs = jax.nn.softmax(topk_vals, axis=-1)
    w1g = w1[topk_idx]                                             # (T, A, I, D)
    w3g = w3[topk_idx]
    w2g = w2[topk_idx]                                             # (T, A, D, I)
    x1 = jax.nn.silu(jnp.einsum('td,taid->tai', x, w1g))
    x3 = jnp.einsum('td,taid->tai', x, w3g)
    eo = jnp.einsum('tai,tadi->tad', x1 * x3, w2g)
    eo = jnp.einsum('tad,ta->td', eo, probs)
    h = jax.nn.silu(jnp.dot(x, sw1.T)) * jnp.dot(x, sw3.T)
    so = jnp.dot(h, sw2.T)
    return eo + so


if __name__ == "__main__":
    # ModelArgs defaults: dim=16, intermediate_size=64, num_experts=8,
    # router_topk=2, num_shared_experts=1
    dim, inter, n_exp, topk, n_shared = 16, 64, 8, 2, 1
    shared_inter = inter * n_shared
    batch, seq = 2, 4
    T = batch * seq

    key = jax.random.PRNGKey(0)
    ks = jax.random.split(key, 8)
    scale = 0.1
    x = jax.random.normal(ks[0], (batch, seq, dim), dtype=jnp.float32)
    gate_w = scale * jax.random.normal(ks[1], (n_exp, dim), dtype=jnp.float32)
    w1 = scale * jax.random.normal(ks[2], (n_exp, inter, dim), dtype=jnp.float32)
    w2 = scale * jax.random.normal(ks[3], (n_exp, dim, inter), dtype=jnp.float32)
    w3 = scale * jax.random.normal(ks[4], (n_exp, inter, dim), dtype=jnp.float32)
    sw1 = scale * jax.random.normal(ks[5], (shared_inter, dim), dtype=jnp.float32)
    sw3 = scale * jax.random.normal(ks[6], (shared_inter, dim), dtype=jnp.float32)
    sw2 = scale * jax.random.normal(ks[7], (dim, shared_inter), dtype=jnp.float32)

    x_flat = x.reshape(-1, dim)  # matches torch x.view(-1, self.dim)

    out = moe_feed_forward(x_flat, gate_w, w1, w3, w2, sw1, sw3, sw2,
                           num_experts=n_exp, router_topk=topk)
    out = jax.block_until_ready(out)

    ref = _reference(x_flat, gate_w, w1, w3, w2, sw1, sw3, sw2, router_topk=topk)
    assert out.shape == (T, dim)
    # bf16 weights/activations in the kernel, f32 reference -> loosened tolerance.
    assert jnp.allclose(out, ref, rtol=2e-2, atol=1e-2), (
        f"max abs err {jnp.max(jnp.abs(out - ref))}")

    print("KERNEL_OK")
</pallas_src>

<mosaic_0001>
module attributes {stable_mosaic.version = 11 : i64} {
  func.func @_moe_kernel(%arg0: i32, %arg1: i32, %arg2: i32, %arg3: memref<9x1xi32, #tpu.memory_space<smem>>, %arg4: memref<9x1xi32, #tpu.memory_space<smem>>, %arg5: memref<16x16xbf16, #tpu.memory_space<vmem>>, %arg6: memref<9x16x1xf32, #tpu.memory_space<vmem>>, %arg7: memref<1x1x16x256xbf16, #tpu.memory_space<vmem>>, %arg8: memref<1x1x128x16xbf16, #tpu.memory_space<vmem>>, %arg9: memref<16x16xf32, #tpu.memory_space<vmem>>) attributes {dimension_semantics = [#tpu.dimension_semantics<parallel>, #tpu.dimension_semantics<arbitrary>, #tpu.dimension_semantics<arbitrary>], iteration_bounds = array<i64: 1, 9, 1>, scalar_prefetch = 2 : i64, scratch_operands = 0 : i64, tpu.core_type = #tpu.core_type<tc>, window_params = [{transform_indices = @transform_0, window_bounds = array<i64: 16, 16>}, {transform_indices = @transform_1, window_bounds = array<i64: 9, 16, 1>}, {transform_indices = @transform_2, window_bounds = array<i64: 1, 1, 16, 256>}, {transform_indices = @transform_3, window_bounds = array<i64: 1, 1, 128, 16>}, {transform_indices = @transform_4, window_bounds = array<i64: 16, 16>}]} {
    %c0_i32 = arith.constant 0 : i32
    %0 = arith.cmpi eq, %arg1, %c0_i32 : i32
    %c0_i32_0 = arith.constant 0 : i32
    %1 = arith.cmpi eq, %arg2, %c0_i32_0 : i32
    %2 = arith.andi %0, %1 : i1
    %3 = arith.index_cast %arg1 : i32 to index
    %4 = arith.index_cast %arg0 : i32 to index
    %5 = memref.load %arg4[%3, %4] : memref<9x1xi32, #tpu.memory_space<smem>>
    %c0_i32_1 = arith.constant 0 : i32
    %6 = arith.cmpi sgt, %5, %c0_i32_1 : i32
    %7 = arith.extui %6 : i1 to i32
    %c0_i32_2 = arith.constant 0 : i32
    %8 = arith.cmpi ne, %7, %c0_i32_2 : i32
    scf.if %8 {
      %c0 = arith.constant 0 : index
      %c0_3 = arith.constant 0 : index
      %9 = vector.load %arg5[%c0, %c0_3] : memref<16x16xbf16, #tpu.memory_space<vmem>>, vector<16x16xbf16>
      %c0_4 = arith.constant 0 : index
      %c0_5 = arith.constant 0 : index
      %c0_6 = arith.constant 0 : index
      %c0_7 = arith.constant 0 : index
      %10 = vector.load %arg7[%c0_4, %c0_5, %c0_6, %c0_7] : memref<1x1x16x256xbf16, #tpu.memory_space<vmem>>, vector<1x1x16x256xbf16>
      %11 = vector.shape_cast %10 : vector<1x1x16x256xbf16> to vector<16x256xbf16>
      %cst = arith.constant dense<0.000000e+00> : vector<16x256xf32>
      %12 = tpu.matmul %9, %11, %cst {dimension_numbers = #tpu.dot_dimension_numbers<[1], [0], [0], [1], [0, 0, 1, 1], [], []>} : vector<16x16xbf16>, vector<16x256xbf16>, vector<16x256xf32> -> vector<16x256xf32>
      %13 = vector.extract_strided_slice %12 {offsets = [0, 0], sizes = [16, 128], strides = [1, 1]} : vector<16x256xf32> to vector<16x128xf32>
      %14 = arith.negf %13 : vector<16x128xf32>
      %15 = math.exp %14 : vector<16x128xf32>
      %cst_8 = arith.constant 1.000000e+00 : f32
      %16 = vector.broadcast %cst_8 : f32 to vector<16x128xf32>
      %17 = arith.addf %16, %15 : vector<16x128xf32>
      %18 = arith.divf %16, %17 : vector<16x128xf32>
      %19 = arith.mulf %13, %18 : vector<16x128xf32>
      %20 = vector.extract_strided_slice %12 {offsets = [0, 128], sizes = [16, 128], strides = [1, 1]} : vector<16x256xf32> to vector<16x128xf32>
      %21 = arith.mulf %19, %20 : vector<16x128xf32>
      %22 = arith.index_cast %arg1 : i32 to index
      %c0_9 = arith.constant 0 : index
      %c0_10 = arith.constant 0 : index
      %23 = vector.load %arg6[%22, %c0_9, %c0_10] : memref<9x16x1xf32, #tpu.memory_space<vmem>>, vector<1x16x1xf32>
      %24 = vector.shape_cast %23 : vector<1x16x1xf32> to vector<16x1xf32>
      %25 = arith.truncf %21 : vector<16x128xf32> to vector<16x128xbf16>
      %c0_11 = arith.constant 0 : index
      %c0_12 = arith.constant 0 : index
      %c0_13 = arith.constant 0 : index
      %c0_14 = arith.constant 0 : index
      %26 = vector.load %arg8[%c0_11, %c0_12, %c0_13, %c0_14] : memref<1x1x128x16xbf16, #tpu.memory_space<vmem>>, vector<1x1x128x16xbf16>
      %27 = vector.shape_cast %26 : vector<1x1x128x16xbf16> to vector<128x16xbf16>
      %cst_15 = arith.constant dense<0.000000e+00> : vector<16x16xf32>
      %28 = tpu.matmul %25, %27, %cst_15 {dimension_numbers = #tpu.dot_dimension_numbers<[1], [0], [0], [1], [0, 0, 1, 1], [], []>} : vector<16x128xbf16>, vector<128x16xbf16>, vector<16x16xf32> -> vector<16x16xf32>
      %29 = vector.broadcast %24 : vector<16x1xf32> to vector<16x16xf32>
      %30 = arith.mulf %29, %28 : vector<16x16xf32>
      %31 = arith.extui %2 : i1 to i32
      %c0_i32_16 = arith.constant 0 : i32
      %32 = arith.cmpi ne, %31, %c0_i32_16 : i32
      scf.if %32 {
        %c0_18 = arith.constant 0 : index
        %c0_19 = arith.constant 0 : index
        %36 = vector.load %arg9[%c0_18, %c0_19] : memref<16x16xf32, #tpu.memory_space<vmem>>, vector<16x16xf32>
        tpu.vector_store %arg9[%c0_18, %c0_19], %30 {strides = array<i32>} : memref<16x16xf32, #tpu.memory_space<vmem>>, vector<16x16xf32>,
      } else {
      }
      %true = arith.constant true
      %33 = arith.xori %2, %true : i1
      %34 = arith.extui %33 : i1 to i32
      %c0_i32_17 = arith.constant 0 : i32
      %35 = arith.cmpi ne, %34, %c0_i32_17 : i32
      scf.if %35 {
        %c0_18 = arith.constant 0 : index
        %c0_19 = arith.constant 0 : index
        %36 = vector.load %arg9[%c0_18, %c0_19] : memref<16x16xf32, #tpu.memory_space<vmem>>, vector<16x16xf32>
        %37 = arith.addf %36, %30 : vector<16x16xf32>
        %c0_20 = arith.constant 0 : index
        %c0_21 = arith.constant 0 : index
        %38 = vector.load %arg9[%c0_20, %c0_21] : memref<16x16xf32, #tpu.memory_space<vmem>>, vector<16x16xf32>
        tpu.vector_store %arg9[%c0_20, %c0_21], %37 {strides = array<i32>} : memref<16x16xf32, #tpu.memory_space<vmem>>, vector<16x16xf32>,
      } else {
      }
    } else {
    }
    return
  }
  func.func @transform_0(%arg0: i32, %arg1: i32, %arg2: i32, %arg3: memref<9x1xi32, #tpu.memory_space<smem>>, %arg4: memref<9x1xi32, #tpu.memory_space<smem>>) -> (i32, i32) {
    %c0_i32 = arith.constant 0 : i32
    %c0_i32_0 = arith.constant 0 : i32
    return %arg0, %c0_i32 : i32, i32
  }
  func.func @transform_1(%arg0: i32, %arg1: i32, %arg2: i32, %arg3: memref<9x1xi32, #tpu.memory_space<smem>>, %arg4: memref<9x1xi32, #tpu.memory_space<smem>>) -> (i32, i32, i32) {
    %c0_i32 = arith.constant 0 : i32
    %c0_i32_0 = arith.constant 0 : i32
    %c0_i32_1 = arith.constant 0 : i32
    return %c0_i32, %arg0, %c0_i32_0 : i32, i32, i32
  }
  func.func @transform_2(%arg0: i32, %arg1: i32, %arg2: i32, %arg3: memref<9x1xi32, #tpu.memory_space<smem>>, %arg4: memref<9x1xi32, #tpu.memory_space<smem>>) -> (i32, i32, i32, i32) {
    %0 = arith.index_cast %arg1 : i32 to index
    %1 = arith.index_cast %arg0 : i32 to index
    %2 = memref.load %arg4[%0, %1] : memref<9x1xi32, #tpu.memory_space<smem>>
    %c0_i32 = arith.constant 0 : i32
    %3 = arith.cmpi sgt, %2, %c0_i32 : i32
    %4 = arith.index_cast %arg1 : i32 to index
    %5 = arith.index_cast %arg0 : i32 to index
    %6 = memref.load %arg3[%4, %5] : memref<9x1xi32, #tpu.memory_space<smem>>
    %c0_i32_0 = arith.constant 0 : i32
    %7 = arith.select %3, %arg2, %c0_i32_0 : i32
    %c0_i32_1 = arith.constant 0 : i32
    %c0_i32_2 = arith.constant 0 : i32
    %c0_i32_3 = arith.constant 0 : i32
    return %6, %7, %c0_i32_1, %c0_i32_2 : i32, i32, i32, i32
  }
  func.func @transform_3(%arg0: i32, %arg1: i32, %arg2: i32, %arg3: memref<9x1xi32, #tpu.memory_space<smem>>, %arg4: memref<9x1xi32, #tpu.memory_space<smem>>) -> (i32, i32, i32, i32) {
    %0 = arith.index_cast %arg1 : i32 to index
    %1 = arith.index_cast %arg0 : i32 to index
    %2 = memref.load %arg4[%0, %1] : memref<9x1xi32, #tpu.memory_space<smem>>
    %c0_i32 = arith.constant 0 : i32
    %3 = arith.cmpi sgt, %2, %c0_i32 : i32
    %4 = arith.index_cast %arg1 : i32 to index
    %5 = arith.index_cast %arg0 : i32 to index
    %6 = memref.load %arg3[%4, %5] : memref<9x1xi32, #tpu.memory_space<smem>>
    %c0_i32_0 = arith.constant 0 : i32
    %7 = arith.select %3, %arg2, %c0_i32_0 : i32
    %c0_i32_1 = arith.constant 0 : i32
    %c0_i32_2 = arith.constant 0 : i32
    %c0_i32_3 = arith.constant 0 : i32
    return %6, %7, %c0_i32_1, %c0_i32_2 : i32, i32, i32, i32
  }
  func.func @transform_4(%arg0: i32, %arg1: i32, %arg2: i32, %arg3: memref<9x1xi32, #tpu.memory_space<smem>>, %arg4: memref<9x1xi32, #tpu.memory_space<smem>>) -> (i32, i32) {
    %c0_i32 = arith.constant 0 : i32
    %c0_i32_0 = arith.constant 0 : i32
    return %arg0, %c0_i32 : i32, i32
  }
}

</mosaic_0001>

<llo_original>
// kernel: moe_feed_forward.1
$region0: #{moe_feed_forward.1}
  #allocation0 [shape = 'u32[]', space=smem, size = 0x4, offset = 0x4, fixed_abs, tag = 'smem constant byte address 0x4 - core index']
  #allocation1 [shape = 'u32[144,128]{1,0:T(1,128)}', space=vmem, size = 0x12000, scoped, tag = 'internal scratch']
  #allocation2 [shape = 's32[1]{0}', space=sflag, size = 0x4, scoped, tag = 'scoped memory for moe_feed_forward.1']
  #allocation3 [shape = 'u8[8192]{0}', space=smem, size = 0x2000, scoped, tag = 'prefetched SMEM operand 0']
  #allocation4 [shape = 'u8[8192]{0}', space=smem, size = 0x2000, scoped, tag = 'prefetched SMEM operand 1']
  %s0 = inlined_call_operand.vmem [shape: s32[9,1], index: 0, kind: input, shape index: {}]
  %s1 = inlined_call_operand.vmem [shape: s32[9,1], index: 1, kind: input, shape index: {}]
  %s2 = inlined_call_operand.vmem [shape: bf16[16,16], index: 2, kind: input, shape index: {}]
  %s3 = inlined_call_operand.vmem [shape: f32[9,16,1], index: 3, kind: input, shape index: {}]
  %s4 = inlined_call_operand.vmem [shape: bf16[9,1,16,256], index: 4, kind: input, shape index: {}]
  %s5 = inlined_call_operand.vmem [shape: bf16[9,1,128,16], index: 5, kind: input, shape index: {}]
  %s6 = inlined_call_operand.vmem [shape: f32[16,16], index: 6, kind: output, shape index: {}]
  %s7 = sld [smem:[#allocation0]]
  $region61: #{moe_feed_forward.1} parent=0
    _
  %s9 = ssub.s32 1, %s7
  %s10 = scalar_select 0, %s9, %s7
  %s11 = sshll.u32 %s0, 4
  %s12 = int_to_ptr.vmem [resolvable:$true] %s11
  %14 = dma.vmem_to_smem %s12, 256, [#allocation3], [#allocation2]
  %s15 = sshll.u32 %s1, 4
  %s16 = int_to_ptr.vmem [resolvable:$true] %s15
  %18 = dma.vmem_to_smem %s16, 256, [#allocation4], [#allocation2]
  %19 = dma.done [#allocation2], 512
  %20 = sfence
  loop: start=0, step=1, limit=11
  $region2: #{moe_feed_forward.1} parent=0 // loop_pre_header
    _
  $region3: #{moe_feed_forward.1} parent=0 // loop_header
    %s22 = sphi 0, %s26
    %p23 = scmp.ge.s32.totalorder %s22, 11
    %s29 = sphi 0, %s48
    %s30 = sphi 0, %s44
    %s31 = sphi 0, %s40
    %s32 = sphi 0, %s29
    %s33 = sphi 0, %s30
    %s34 = sphi 0, %s31
    %s35 = sphi 0, %s32
    %s36 = sphi 0, %s33
    %s37 = sphi 0, %s34
    %s51 = sphi 0, %s53
    %s54 = sphi 0, %s51
    %s55 = sphi 0, %s54
    %s71 = sphi 0, %s55
    %s77 = sphi 0, %s79
    %s80 = sphi 0, %s77
    %s81 = sphi 0, %s80
    %s97 = sphi 0, %s81
    %s127 = sphi 0, %s129
    %s130 = sphi 0, %s127
    %s131 = sphi 0, %s130
    %s147 = sphi 0, %s131
    %s177 = sphi 0, %s179
    %s180 = sphi 0, %s177
    %s181 = sphi 0, %s180
    %s197 = sphi 0, %s181
    %s203 = sphi 0, %s205
    %s206 = sphi 0, %s203
    %s207 = sphi 0, %s206
    %s223 = sphi 0, %s207
  $region4: #{moe_feed_forward.1} parent=0 // loop_header_branch
    %25 = sbr.rel (%p23) target = $region8
  $region5: #{moe_feed_forward.1} parent=0 // loop_body
    %s27 = ssub.s32 %s22, 1
    %s28 = ssub.s32 %s22, 2
    %s38 = sadd.s32 1, %s31
    %p39 = scmp.ge.s32.totalorder %s38, 1
    %s40 = scalar_select %p39, 0, %s38
    %s41 = sadd.s32 1, %s30
    %s42 = scalar_select %p39, %s41, %s30
    %p43 = scmp.ge.s32.totalorder %s42, 9
    %s44 = scalar_select %p43, 0, %s42
    %s45 = sadd.s32 1, %s29
    %s46 = scalar_select %p43, %s45, %s29
    %p47 = scmp.ge.s32.totalorder %s46, 1
    %s48 = scalar_select %p47, 0, %s46
    %s49 = ssub.s32 %s29, %s48
    %p50 = scmp.eq.s32.totalorder %s49, 0
    %s52 = sadd.s32 %s51, 1
    %s53 = scalar_select %p50, %s51, %s52
    %p56 = pneg %p50
    %p57 = scmp.eq.s32.totalorder %s22, 8
    %p58 = por %p56, %p57
    %p59 = scmp.ne.s32.totalorder %s51, %s54
    %p60 = scmp.eq.s32.totalorder %s22, 0
    %p61 = por %p59, %p60
    %p62 = scmp.ne.s32.totalorder %s51, %s54
    %p63 = scmp.eq.s32.totalorder %s27, 8
    %p64 = por %p62, %p63
    %p65 = scmp.ne.s32.totalorder %s54, %s55
    %p66 = scmp.eq.s32.totalorder %s27, 0
    %p67 = por %p65, %p66
    %p68 = scmp.ne.s32.totalorder %s54, %s55
    %p69 = scmp.eq.s32.totalorder %s28, 8
    %p70 = por %p68, %p69
    %p72 = scmp.ne.s32.totalorder %s55, %s71
    %p73 = scmp.eq.s32.totalorder %s28, 0
    %p74 = por %p72, %p73
    %s75 = ssub.s32 %s29, %s48
    %p76 = scmp.eq.s32.totalorder %s75, 0
    %s78 = sadd.s32 %s77, 1
    %s79 = scalar_select %p76, %s77, %s78
    %p82 = pneg %p76
    %p83 = scmp.eq.s32.totalorder %s22, 8
    %p84 = por %p82, %p83
    %p85 = scmp.ne.s32.totalorder %s77, %s80
    %p86 = scmp.eq.s32.totalorder %s22, 0
    %p87 = por %p85, %p86
    %p88 = scmp.ne.s32.totalorder %s77, %s80
    %p89 = scmp.eq.s32.totalorder %s27, 8
    %p90 = por %p88, %p89
    %p91 = scmp.ne.s32.totalorder %s80, %s81
    %p92 = scmp.eq.s32.totalorder %s27, 0
    %p93 = por %p91, %p92
    %p94 = scmp.ne.s32.totalorder %s80, %s81
    %p95 = scmp.eq.s32.totalorder %s28, 8
    %p96 = por %p94, %p95
    %p98 = scmp.ne.s32.totalorder %s81, %s97
    %p99 = scmp.eq.s32.totalorder %s28, 0
    %p100 = por %p98, %p99
    %s101 = sshra.s32 %s29, 7
    %s102 = sand.u32 %s29, 127
    %s103 = sadd.s32 %s101, %s30
    %s104 = smul.u32 %s103, 128
    %s105 = sshra.s32 %s29, 7
    %s106 = sand.u32 %s29, 127
    %s107 = sadd.s32 %s104, %s106
    %s108 = sld [smem:[#allocation4 + %s107]]
    %p109 = scmp.gt.s32.totalorder %s108, 0
    %s110 = sld [smem:[#allocation3 + %s107]]
    %s111 = scalar_select %p109, %s31, 0
    %s112 = sshra.s32 %s48, 7
    %s113 = sand.u32 %s48, 127
    %s114 = sadd.s32 %s112, %s44
    %s115 = smul.u32 %s114, 128
    %s116 = sshra.s32 %s48, 7
    %s117 = sand.u32 %s48, 127
    %s118 = sadd.s32 %s115, %s117
    %s119 = sld [smem:[#allocation4 + %s118]]
    %p120 = scmp.gt.s32.totalorder %s119, 0
    %s121 = sld [smem:[#allocation3 + %s118]]
    %s122 = scalar_select %p120, %s40, 0
    %s123 = ssub.s32 %s110, %s121
    %s124 = ssub.s32 %s111, %s122
    %s125 = sor.u32 %s123, %s124
    %p126 = scmp.eq.s32.totalorder %s125, 0
    %s128 = sadd.s32 %s127, 1
    %s129 = scalar_select %p126, %s127, %s128
    %p132 = pneg %p126
    %p133 = scmp.eq.s32.totalorder %s22, 8
    %p134 = por %p132, %p133
    %p135 = scmp.ne.s32.totalorder %s127, %s130
    %p136 = scmp.eq.s32.totalorder %s22, 0
    %p137 = por %p135, %p136
    %p138 = scmp.ne.s32.totalorder %s127, %s130
    %p139 = scmp.eq.s32.totalorder %s27, 8
    %p140 = por %p138, %p139
    %p141 = scmp.ne.s32.totalorder %s130, %s131
    %p142 = scmp.eq.s32.totalorder %s27, 0
    %p143 = por %p141, %p142
    %p144 = scmp.ne.s32.totalorder %s130, %s131
    %p145 = scmp.eq.s32.totalorder %s28, 8
    %p146 = por %p144, %p145
    %p148 = scmp.ne.s32.totalorder %s131, %s147
    %p149 = scmp.eq.s32.totalorder %s28, 0
    %p150 = por %p148, %p149
    %s151 = sshra.s32 %s29, 7
    %s152 = sand.u32 %s29, 127
    %s153 = sadd.s32 %s151, %s30
    %s154 = smul.u32 %s153, 128
    %s155 = sshra.s32 %s29, 7
    %s156 = sand.u32 %s29, 127
    %s157 = sadd.s32 %s154, %s156
    %s158 = sld [smem:[#allocation4 + %s157]]
    %p159 = scmp.gt.s32.totalorder %s158, 0
    %s160 = sld [smem:[#allocation3 + %s157]]
    %s161 = scalar_select %p159, %s31, 0
    %s162 = sshra.s32 %s48, 7
    %s163 = sand.u32 %s48, 127
    %s164 = sadd.s32 %s162, %s44
    %s165 = smul.u32 %s164, 128
    %s166 = sshra.s32 %s48, 7
    %s167 = sand.u32 %s48, 127
    %s168 = sadd.s32 %s165, %s167
    %s169 = sld [smem:[#allocation4 + %s168]]
    %p170 = scmp.gt.s32.totalorder %s169, 0
    %s171 = sld [smem:[#allocation3 + %s168]]
    %s172 = scalar_select %p170, %s40, 0
    %s173 = ssub.s32 %s160, %s171
    %s174 = ssub.s32 %s161, %s172
    %s175 = sor.u32 %s173, %s174
    %p176 = scmp.eq.s32.totalorder %s175, 0
    %s178 = sadd.s32 %s177, 1
    %s179 = scalar_select %p176, %s177, %s178
    %p182 = pneg %p176
    %p183 = scmp.eq.s32.totalorder %s22, 8
    %p184 = por %p182, %p183
    %p185 = scmp.ne.s32.totalorder %s177, %s180
    %p186 = scmp.eq.s32.totalorder %s22, 0
    %p187 = por %p185, %p186
    %p188 = scmp.ne.s32.totalorder %s177, %s180
    %p189 = scmp.eq.s32.totalorder %s27, 8
    %p190 = por %p188, %p189
    %p191 = scmp.ne.s32.totalorder %s180, %s181
    %p192 = scmp.eq.s32.totalorder %s27, 0
    %p193 = por %p191, %p192
    %p194 = scmp.ne.s32.totalorder %s180, %s181
    %p195 = scmp.eq.s32.totalorder %s28, 8
    %p196 = por %p194, %p195
    %p198 = scmp.ne.s32.totalorder %s181, %s197
    %p199 = scmp.eq.s32.totalorder %s28, 0
    %p200 = por %p198, %p199
    %s201 = ssub.s32 %s29, %s48
    %p202 = scmp.eq.s32.totalorder %s201, 0
    %s204 = sadd.s32 %s203, 1
    %s205 = scalar_select %p202, %s203, %s204
    %p208 = pneg %p202
    %p209 = scmp.eq.s32.totalorder %s22, 8
    %p210 = por %p208, %p209
    %p211 = scmp.ne.s32.totalorder %s203, %s206
    %p212 = scmp.eq.s32.totalorder %s22, 0
    %p213 = por %p211, %p212
    %p214 = scmp.ne.s32.totalorder %s203, %s206
    %p215 = scmp.eq.s32.totalorder %s27, 8
    %p216 = por %p214, %p215
    %p217 = scmp.ne.s32.totalorder %s206, %s207
    %p218 = scmp.eq.s32.totalorder %s27, 0
    %p219 = por %p217, %p218
    %p220 = scmp.ne.s32.totalorder %s206, %s207
    %p221 = scmp.eq.s32.totalorder %s28, 8
    %p222 = por %p220, %p221
    %p224 = scmp.ne.s32.totalorder %s207, %s223
    %p225 = scmp.eq.s32.totalorder %s28, 0
    %p226 = por %p224, %p225
    %p227 = scmp.le.s32.totalorder 1, %s22
    %p228 = scmp.lt.s32.totalorder %s22, 10
    %p229 = pnand %p227, %p228
    %p230 = pneg %p229
    // Predicated region
    $region9: #{moe_feed_forward.1} parent=5 // pred_check
      _
    $region10: #{moe_feed_forward.1} parent=5 // pred_check_branch
      %232 = sbr.rel (%p229) target = $region12
    $region11: #{moe_feed_forward.1} parent=5 // pred_region
      %s233 = ssub.s32 %s22, 1
      // Predicated region
      $region13: #{moe_feed_forward.1} parent=11 // pred_check
        %p234 = pneg %p67
      $region14: #{moe_feed_forward.1} parent=11 // pred_check_branch
        %236 = sbr.rel (%p234) target = $region16
      $region15: #{moe_feed_forward.1} parent=11 // pred_region
        %s237 = smul.u32 2, %s32
        %p238 = scmp.lt.s32.totalorder %s237, 1
        %s239 = scalar_select %p238, %s237, 1
        %s240 = smul.addr %s239, 4
        %s241 = scalar_lea.vmem %s2, %s240
        %s242 = smul.u32 2, %s32
      $region16: #{moe_feed_forward.1} parent=11 // pred_fallthru
        _
      // Predicated region
      $region17: #{moe_feed_forward.1} parent=11 // pred_check
        %p243 = pneg %p93
      $region18: #{moe_feed_forward.1} parent=11 // pred_check_branch
        %245 = sbr.rel (%p243) target = $region20
      $region19: #{moe_feed_forward.1} parent=11 // pred_region
        %s246 = smul.u32 2, %s32
        %p247 = scmp.lt.s32.totalorder %s246, 1
        %s248 = scalar_select %p247, %s246, 1
        %s249 = smul.addr %s248, 8
        %s250 = scalar_lea.vmem %s3, %s249
        %s251 = smul.u32 2, %s32
      $region20: #{moe_feed_forward.1} parent=11 // pred_fallthru
        _
    $region12: #{moe_feed_forward.1} parent=5 // pred_fallthru
      _
    %p252 = scmp.lt.s32.totalorder %s22, 9
    // Predicated region
    $region21: #{moe_feed_forward.1} parent=5 // pred_check
      %p253 = pneg %p252
    $region22: #{moe_feed_forward.1} parent=5 // pred_check_branch
      %255 = sbr.rel (%p253) target = $region24
    $region23: #{moe_feed_forward.1} parent=5 // pred_region
      // Predicated region
      $region25: #{moe_feed_forward.1} parent=23 // pred_check
        %p256 = pneg %p137
      $region26: #{moe_feed_forward.1} parent=23 // pred_check_branch
        %258 = sbr.rel (%p256) target = $region28
      $region27: #{moe_feed_forward.1} parent=23 // pred_region
        %s259 = sshra.s32 %s29, 7
        %s260 = sand.u32 %s29, 127
        %s261 = sadd.s32 %s259, %s30
        %s262 = smul.u32 %s261, 128
        %s263 = sshra.s32 %s29, 7
        %s264 = sand.u32 %s29, 127
        %s265 = sadd.s32 %s262, %s264
        %s266 = sld [smem:[#allocation4 + %s265]]
        %p267 = scmp.gt.s32.totalorder %s266, 0
        %s268 = sld [smem:[#allocation3 + %s265]]
        %s269 = scalar_select %p267, %s31, 0
        %p270 = scmp.lt.s32.totalorder %s268, 8
        %s271 = scalar_select %p270, %s268, 8
        %p272 = scmp.lt.s32.totalorder %s269, 0
        %s273 = scalar_select %p272, %s269, 0
        %s274 = smul.addr %s273, 4
        %s275 = smul.addr %s271, 4
        %s276 = sadd.s32 %s274, %s275
        %s277 = smul.addr %s276, 4
        %s278 = scalar_lea.vmem %s4, %s277
        %s279 = sshra.s32 %s29, 7
        %s280 = sand.u32 %s29, 127
        %s281 = sadd.s32 %s279, %s30
        %s282 = smul.u32 %s281, 128
        %s283 = sshra.s32 %s29, 7
        %s284 = sand.u32 %s29, 127
        %s285 = sadd.s32 %s282, %s284
        %s286 = sld [smem:[#allocation4 + %s285]]
        %p287 = scmp.gt.s32.totalorder %s286, 0
        %s288 = sld [smem:[#allocation3 + %s285]]
        %s289 = scalar_select %p287, %s31, 0
      $region28: #{moe_feed_forward.1} parent=23 // pred_fallthru
        _
      // Predicated region
      $region29: #{moe_feed_forward.1} parent=23 // pred_check
        %p290 = pneg %p187
      $region30: #{moe_feed_forward.1} parent=23 // pred_check_branch
        %292 = sbr.rel (%p290) target = $region32
      $region31: #{moe_feed_forward.1} parent=23 // pred_region
        %s293 = sshra.s32 %s29, 7
        %s294 = sand.u32 %s29, 127
        %s295 = sadd.s32 %s293, %s30
        %s296 = smul.u32 %s295, 128
        %s297 = sshra.s32 %s29, 7
        %s298 = sand.u32 %s29, 127
        %s299 = sadd.s32 %s296, %s298
        %s300 = sld [smem:[#allocation4 + %s299]]
        %p301 = scmp.gt.s32.totalorder %s300, 0
        %s302 = sld [smem:[#allocation3 + %s299]]
        %s303 = scalar_select %p301, %s31, 0
        %p304 = scmp.lt.s32.totalorder %s302, 8
        %s305 = scalar_select %p304, %s302, 8
        %p306 = scmp.lt.s32.totalorder %s303, 0
        %s307 = scalar_select %p306, %s303, 0
        %s308 = smul.addr %s307, 16
        %s309 = smul.addr %s305, 16
        %s310 = sadd.s32 %s308, %s309
        %s311 = smul.addr %s310, 4
        %s312 = scalar_lea.vmem %s5, %s311
        %s313 = sshra.s32 %s29, 7
        %s314 = sand.u32 %s29, 127
        %s315 = sadd.s32 %s313, %s30
        %s316 = smul.u32 %s315, 128
        %s317 = sshra.s32 %s29, 7
        %s318 = sand.u32 %s29, 127
        %s319 = sadd.s32 %s316, %s318
        %s320 = sld [smem:[#allocation4 + %s319]]
        %p321 = scmp.gt.s32.totalorder %s320, 0
        %s322 = sld [smem:[#allocation3 + %s319]]
        %s323 = scalar_select %p321, %s31, 0
      $region32: #{moe_feed_forward.1} parent=23 // pred_fallthru
        _
    $region24: #{moe_feed_forward.1} parent=5 // pred_fallthru
      _
    %p324 = scmp.le.s32.totalorder 1, %s22
    %p325 = scmp.lt.s32.totalorder %s22, 10
    %p326 = pnand %p324, %p325
    %p327 = pneg %p326
    // Predicated region
    $region33: #{moe_feed_forward.1} parent=5 // pred_check
      _
    $region34: #{moe_feed_forward.1} parent=5 // pred_check_branch
      %329 = sbr.rel (%p326) target = $region36
    $region35: #{moe_feed_forward.1} parent=5 // pred_region
      %s330 = ssub.s32 %s22, 1
      %s331 = smul.u32 2, %s32
      %p332 = scmp.lt.s32.totalorder %s331, 1
      %s333 = scalar_select %p332, %s331, 1
      %s334 = smul.addr %s333, 4
      %s335 = scalar_lea.vmem %s2, %s334
      %p336 = pneg %p67
      %p337 = pneg %p64
      %s338 = smul.u32 2, %s32
      %p339 = scmp.lt.s32.totalorder %s338, 1
      %s340 = scalar_select %p339, %s338, 1
      %s341 = smul.addr %s340, 8
      %s342 = scalar_lea.vmem %s3, %s341
      %p343 = pneg %p93
      %p344 = pneg %p90
      %s345 = sshra.s32 %s32, 7
      %s346 = sand.u32 %s32, 127
      %s347 = sadd.s32 %s345, %s33
      %s348 = smul.u32 %s347, 128
      %s349 = sshra.s32 %s32, 7
      %s350 = sand.u32 %s32, 127
      %s351 = sadd.s32 %s348, %s350
      %s352 = sld [smem:[#allocation4 + %s351]]
      %p353 = scmp.gt.s32.totalorder %s352, 0
      %s354 = sld [smem:[#allocation3 + %s351]]
      %s355 = scalar_select %p353, %s34, 0
      %p356 = scmp.lt.s32.totalorder %s354, 8
      %s357 = scalar_select %p356, %s354, 8
      %p358 = scmp.lt.s32.totalorder %s355, 0
      %s359 = scalar_select %p358, %s355, 0
      %s360 = smul.addr %s359, 4
      %s361 = smul.addr %s357, 4
      %s362 = sadd.s32 %s360, %s361
      %s363 = smul.addr %s362, 4
      %s364 = scalar_lea.vmem %s4, %s363
      %p365 = pneg %p143
      %p366 = pneg %p140
      %s367 = sshra.s32 %s32, 7
      %s368 = sand.u32 %s32, 127
      %s369 = sadd.s32 %s367, %s33
      %s370 = smul.u32 %s369, 128
      %s371 = sshra.s32 %s32, 7
      %s372 = sand.u32 %s32, 127
      %s373 = sadd.s32 %s370, %s372
      %s374 = sld [smem:[#allocation4 + %s373]]
      %p375 = scmp.gt.s32.totalorder %s374, 0
      %s376 = sld [smem:[#allocation3 + %s373]]
      %s377 = scalar_select %p375, %s34, 0
      %p378 = scmp.lt.s32.totalorder %s376, 8
      %s379 = scalar_select %p378, %s376, 8
      %p380 = scmp.lt.s32.totalorder %s377, 0
      %s381 = scalar_select %p380, %s377, 0
      %s382 = smul.addr %s381, 16
      %s383 = smul.addr %s379, 16
      %s384 = sadd.s32 %s382, %s383
      %s385 = smul.addr %s384, 4
      %s386 = scalar_lea.vmem %s5, %s385
      %p387 = pneg %p193
      %p388 = pneg %p190
      %p389 = pneg %p219
      %p390 = pneg %p216
      %s391 = smul.u32 2, %s32
      %p392 = scmp.lt.s32.totalorder %s391, 1
      %s393 = scalar_select %p392, %s391, 1
      %s394 = smul.addr %s393, 8
      %s395 = scalar_lea.vmem %s6, %s394
      %s396 = smul.u32 2, %s32
      %p397 = scmp.lt.s32.totalorder %s396, 1
      %s398 = scalar_select %p397, %s396, 1
      %s399 = smul.addr %s398, 4
      %s400 = scalar_lea.vmem %s2, %s399
      %s401 = smul.u32 2, %s32
      %s402 = smul.u32 2, %s32
      %p403 = scmp.lt.s32.totalorder %s402, 1
      %s404 = scalar_select %p403, %s402, 1
      %s405 = smul.addr %s404, 8
      %s406 = scalar_lea.vmem %s3, %s405
      %s407 = smul.u32 2, %s32
      %s408 = sshra.s32 %s32, 7
      %s409 = sand.u32 %s32, 127
      %s410 = sadd.s32 %s408, %s33
      %s411 = smul.u32 %s410, 128
      %s412 = sshra.s32 %s32, 7
      %s413 = sand.u32 %s32, 127
      %s414 = sadd.s32 %s411, %s413
      %s415 = sld [smem:[#allocation4 + %s414]]
      %p416 = scmp.gt.s32.totalorder %s415, 0
      %s417 = sld [smem:[#allocation3 + %s414]]
      %s418 = scalar_select %p416, %s34, 0
      %p419 = scmp.lt.s32.totalorder %s417, 8
      %s420 = scalar_select %p419, %s417, 8
      %p421 = scmp.lt.s32.totalorder %s418, 0
      %s422 = scalar_select %p421, %s418, 0
      %s423 = smul.addr %s422, 4
      %s424 = smul.addr %s420, 4
      %s425 = sadd.s32 %s423, %s424
      %s426 = smul.addr %s425, 4
      %s427 = scalar_lea.vmem %s4, %s426
      %s428 = sshra.s32 %s32, 7
      %s429 = sand.u32 %s32, 127
      %s430 = sadd.s32 %s428, %s33
      %s431 = smul.u32 %s430, 128
      %s432 = sshra.s32 %s32, 7
      %s433 = sand.u32 %s32, 127
      %s434 = sadd.s32 %s431, %s433
      %s435 = sld [smem:[#allocation4 + %s434]]
      %p436 = scmp.gt.s32.totalorder %s435, 0
      %s437 = sld [smem:[#allocation3 + %s434]]
      %s438 = scalar_select %p436, %s34, 0
      %s439 = sshra.s32 %s32, 7
      %s440 = sand.u32 %s32, 127
      %s441 = sadd.s32 %s439, %s33
      %s442 = smul.u32 %s441, 128
      %s443 = sshra.s32 %s32, 7
      %s444 = sand.u32 %s32, 127
      %s445 = sadd.s32 %s442, %s444
      %s446 = sld [smem:[#allocation4 + %s445]]
      %p447 = scmp.gt.s32.totalorder %s446, 0
      %s448 = sld [smem:[#allocation3 + %s445]]
      %s449 = scalar_select %p447, %s34, 0
      %p450 = scmp.lt.s32.totalorder %s448, 8
      %s451 = scalar_select %p450, %s448, 8
      %p452 = scmp.lt.s32.totalorder %s449, 0
      %s453 = scalar_select %p452, %s449, 0
      %s454 = smul.addr %s453, 16
      %s455 = smul.addr %s451, 16
      %s456 = sadd.s32 %s454, %s455
      %s457 = smul.addr %s456, 4
      %s458 = scalar_lea.vmem %s5, %s457
      %s459 = sshra.s32 %s32, 7
      %s460 = sand.u32 %s32, 127
      %s461 = sadd.s32 %s459, %s33
      %s462 = smul.u32 %s461, 128
      %s463 = sshra.s32 %s32, 7
      %s464 = sand.u32 %s32, 127
      %s465 = sadd.s32 %s462, %s464
      %s466 = sld [smem:[#allocation4 + %s465]]
      %p467 = scmp.gt.s32.totalorder %s466, 0
      %s468 = sld [smem:[#allocation3 + %s465]]
      %s469 = scalar_select %p467, %s34, 0
      %s470 = smul.u32 2, %s32
      %p471 = scmp.lt.s32.totalorder %s470, 1
      %s472 = scalar_select %p471, %s470, 1
      %s473 = smul.addr %s472, 8
      %s474 = scalar_lea.vmem %s6, %s473
      %s475 = smul.u32 2, %s32
      %p477 = scmp.eq.s32.totalorder %s33, 0
      %p478 = scmp.eq.s32.totalorder %s34, 0
      %p479 = pnand %p477, %p478
      %p480 = pneg %p479
      %s481 = sshra.s32 %s32, 7
      %s482 = sand.u32 %s32, 127
      %s483 = sadd.s32 %s481, %s33
      %s484 = smul.u32 %s483, 128
      %s485 = sshra.s32 %s32, 7
      %s486 = sand.u32 %s32, 127
      %s487 = sadd.s32 %s484, %s486
      %s488 = sld [smem:[#allocation4 + %s487]]
      %p489 = scmp.gt.s32.totalorder %s488, 0
      // Predicated region
      $region37: #{moe_feed_forward.1} parent=35 // pred_check
        %p490 = pneg %p489
      $region38: #{moe_feed_forward.1} parent=35 // pred_check_branch
        %492 = sbr.rel (%p490) target = $region40
      $region39: #{moe_feed_forward.1} parent=35 // pred_region
        %v493 = vld [vmem:[%s400] sm:$0xf]
        %v494 = vld [vmem:[%s400 + $0x4] sm:$0xf]
        %v495 = vld [vmem:[%s427] sm:$0xff]
        %v496 = vld [vmem:[%s427 + $0x8] sm:$0xff]
        %v499 = vunpack.c.l.b16 %v493
        %v500 = vunpack.c.l.b16 %v494
        %v501 = vpack.c.b16 %v500, %v499
        %v504 = vunpack.c.l.b16 %v495
        %v505 = vunpack.c.h.b16 %v495
        %v506 = vunpack.c.l.b16 %v496
        %v507 = vunpack.c.h.b16 %v496
        %v508 = vpack.c.b16 %v506, %v504
        %v509 = vpack.c.b16 %v507, %v505
        %vm512 = vcmask 130048
        %v514 = vsel %vm512, %v501, 0
        %516 = vmatprep.subr.bf16.mxu0 0
        %517 = vmatpush1.bf16.msra.mxu0 0
        %518 = vmatprep.subr.bf16.mxu0 0
        %519 = vmatpush1.bf16.msra.mxu0 0
        %520 = vmatprep.subr.bf16.mxu0 0
        %521 = vmatpush1.bf16.msra.mxu0 0
        %522 = vmatprep.subr.bf16.mxu0 0
        %523 = vmatpush1.bf16.msra.mxu0 0
        %524 = vmatprep.subr.bf16.mxu0 0
        %525 = vmatpush1.bf16.msra.mxu0 0
        %526 = vmatprep.subr.bf16.mxu0 0
        %527 = vmatpush1.bf16.msra.mxu0 0
        %528 = vmatprep.subr.bf16.mxu0 0
        %529 = vmatpush1.bf16.msra.mxu0 0
        %530 = vmatprep.subr.bf16.mxu0 %v509
        %531 = vmatpush1.bf16.msra.mxu0 %v508
        %532 = vmatprep.subr.bf16.mxu0 0
        %533 = vmatpush2.bf16.msra.mxu0 0
        %534 = vmatprep.subr.bf16.mxu0 0
        %535 = vmatpush2.bf16.msra.mxu0 0
        %536 = vmatprep.subr.bf16.mxu0 0
        %537 = vmatpush2.bf16.msra.mxu0 0
        %538 = vmatprep.subr.bf16.mxu0 0
        %539 = vmatpush2.bf16.msra.mxu0 0
        %540 = vmatprep.subr.bf16.mxu0 0
        %541 = vmatpush2.bf16.msra.mxu0 0
        %542 = vmatprep.subr.bf16.mxu0 0
        %543 = vmatpush2.bf16.msra.mxu0 0
        %544 = vmatprep.subr.bf16.mxu0 0
        %545 = vmatpush2.bf16.msra.mxu0 0
        %546 = vmatprep.subr.bf16.mxu0 0
        %547 = vmatpush2.bf16.msra.mxu0 0
        %548 = vmatprep.mubr.bf16.mxu0 0
        %549 = vmatmul.mubr.bf16.gmra.mxu0 %v514
        %v550 = vpop.f32.mrf.mxu0
        %v551 = vadd.f32 0.0, %v550
        %v552 = vpop.f32.mrf.mxu0
        %v553 = vadd.f32 0.0, %v552
        %v554 = vpop.f32.mrf.mxu0
        %v555 = vadd.f32 0.0, %v554
        %v556 = vpop.f32.mrf.mxu0
        %v557 = vadd.f32 0.0, %v556
        %558 = vdwg.mxu0
        %v559 = vxor.u32 %v551, 2147483648
        %v560 = vxor.u32 %v555, 2147483648
        %v561 = vmul.f32 %v559, 1.442695
        %v562 = vpow.pop %v561
        %v563 = vmul.f32 %v560, 1.442695
        %v564 = vpow.pop %v563
        %v565 = vadd.f32 %v562, 1.0
        %v566 = vadd.f32 %v564, 1.0
        %v567 = vrcp.pop %v565
        %v568 = vmul.f32 1.0, %v567
        %v569 = vrcp.pop %v566
        %v570 = vmul.f32 1.0, %v569
        %v571 = vmul.f32 %v551, %v568
        %v572 = vmul.f32 %v555, %v570
        %v573 = vmul.f32 %v571, %v553
        %v574 = vmul.f32 %v572, %v557
        %s575 = smul.u32 %s33, 16
        %s576 = scalar_lea.vmem %s406, %s575
        %v577 = vld [vmem:[%s576] sm:$0xff]
        %v578 = vld [vmem:[%s576 + $0x8] sm:$0xff]
        %v579 = vpack.c.bf16 %v574, %v573
        %v580 = vld [vmem:[%s458] sm:$0xf]
        %v581 = vld [vmem:[%s458 + $0x4] sm:$0xf]
        %v582 = vld [vmem:[%s458 + $0x8] sm:$0xf]
        %v583 = vld [vmem:[%s458 + $0xc] sm:$0xf]
        %v584 = vld [vmem:[%s458 + $0x10] sm:$0xf]
        %v585 = vld [vmem:[%s458 + $0x14] sm:$0xf]
        %v586 = vld [vmem:[%s458 + $0x18] sm:$0xf]
        %v587 = vld [vmem:[%s458 + $0x1c] sm:$0xf]
        %v588 = vld [vmem:[%s458 + $0x20] sm:$0xf]
        %v589 = vld [vmem:[%s458 + $0x24] sm:$0xf]
        %v590 = vld [vmem:[%s458 + $0x28] sm:$0xf]
        %v591 = vld [vmem:[%s458 + $0x2c] sm:$0xf]
        %v592 = vld [vmem:[%s458 + $0x30] sm:$0xf]
        %v593 = vld [vmem:[%s458 + $0x34] sm:$0xf]
        %v594 = vld [vmem:[%s458 + $0x38] sm:$0xf]
        %v595 = vld [vmem:[%s458 + $0x3c] sm:$0xf]
        %v612 = vunpack.c.l.b16 %v580
        %v613 = vunpack.c.l.b16 %v581
        %v614 = vunpack.c.l.b16 %v582
        %v615 = vunpack.c.l.b16 %v583
        %v616 = vunpack.c.l.b16 %v584
        %v617 = vunpack.c.l.b16 %v585
        %v618 = vunpack.c.l.b16 %v586
        %v619 = vunpack.c.l.b16 %v587
        %v620 = vunpack.c.l.b16 %v588
        %v621 = vunpack.c.l.b16 %v589
        %v622 = vunpack.c.l.b16 %v590
        %v623 = vunpack.c.l.b16 %v591
        %v624 = vunpack.c.l.b16 %v592
        %v625 = vunpack.c.l.b16 %v593
        %v626 = vunpack.c.l.b16 %v594
        %v627 = vunpack.c.l.b16 %v595
        %v628 = vpack.c.b16 %v613, %v612
        %v629 = vpack.c.b16 %v615, %v614
        %v630 = vpack.c.b16 %v617, %v616
        %v631 = vpack.c.b16 %v619, %v618
        %v632 = vpack.c.b16 %v621, %v620
        %v633 = vpack.c.b16 %v623, %v622
        %v634 = vpack.c.b16 %v625, %v624
        %v635 = vpack.c.b16 %v627, %v626
        %644 = vmatprep.subr.bf16.mxu0 0
        %645 = vmatpush1.bf16.msra.mxu0 %v635
        %646 = vmatprep.subr.bf16.mxu0 0
        %647 = vmatpush1.bf16.msra.mxu0 %v634
        %648 = vmatprep.subr.bf16.mxu0 0
        %649 = vmatpush1.bf16.msra.mxu0 %v633
        %650 = vmatprep.subr.bf16.mxu0 0
        %651 = vmatpush1.bf16.msra.mxu0 %v632
        %652 = vmatprep.subr.bf16.mxu0 0
        %653 = vmatpush1.bf16.msra.mxu0 %v631
        %654 = vmatprep.subr.bf16.mxu0 0
        %655 = vmatpush1.bf16.msra.mxu0 %v630
        %656 = vmatprep.subr.bf16.mxu0 0
        %657 = vmatpush1.bf16.msra.mxu0 %v629
        %658 = vmatprep.subr.bf16.mxu0 0
        %659 = vmatpush1.bf16.msra.mxu0 %v628
        %660 = vmatprep.subr.bf16.mxu0 0
        %661 = vmatpush2.bf16.msra.mxu0 0
        %662 = vmatprep.subr.bf16.mxu0 0
        %663 = vmatpush2.bf16.msra.mxu0 0
        %664 = vmatprep.subr.bf16.mxu0 0
        %665 = vmatpush2.bf16.msra.mxu0 0
        %666 = vmatprep.subr.bf16.mxu0 0
        %667 = vmatpush2.bf16.msra.mxu0 0
        %668 = vmatprep.subr.bf16.mxu0 0
        %669 = vmatpush2.bf16.msra.mxu0 0
        %670 = vmatprep.subr.bf16.mxu0 0
        %671 = vmatpush2.bf16.msra.mxu0 0
        %672 = vmatprep.subr.bf16.mxu0 0
        %673 = vmatpush2.bf16.msra.mxu0 0
        %674 = vmatprep.subr.bf16.mxu0 0
        %675 = vmatpush2.bf16.msra.mxu0 0
        %676 = vmatprep.mubr.bf16.mxu0 0
        %677 = vmatmul.mubr.bf16.gmra.mxu0 %v579
        %v678 = vpop.f32.mrf.mxu0
        %v679 = vadd.f32 0.0, %v678
        %v680 = vpop.f32.mrf.mxu0
        %v681 = vpop.f32.mrf.mxu0
        %v682 = vadd.f32 0.0, %v681
        %v683 = vpop.f32.mrf.mxu0
        %684 = vdwg.mxu0
        %686 = vset.pattern.permute.xlu0 0
        %687 = vperm.xlu0 %686, %v577
        %v688 = vpop.permute.xlu0 %687
        %691 = vset.pattern.permute.xlu0 0
        %692 = vperm.xlu0 %691, %v578
        %v693 = vpop.permute.xlu0 %692
        %v695 = vmul.f32 %v688, %v679
        %v696 = vmul.f32 %v693, %v682
        // Predicated region
        $region41: #{moe_feed_forward.1} parent=39 // pred_check
          _
        $region42: #{moe_feed_forward.1} parent=39 // pred_check_branch
          %698 = sbr.rel (%p479) target = $region44
        $region43: #{moe_feed_forward.1} parent=39 // pred_region
          %699 = vst.msk [vmem:[%s474] sm:$0xff] %vm512, %v695
          %700 = vst.msk [vmem:[%s474 + $0x8] sm:$0xff] %vm512, %v696
        $region44: #{moe_feed_forward.1} parent=39 // pred_fallthru
          _
        %p701 = pneg %p480
        // Predicated region
        $region45: #{moe_feed_forward.1} parent=39 // pred_check
          _
        $region46: #{moe_feed_forward.1} parent=39 // pred_check_branch
          %703 = sbr.rel (%p480) target = $region48
        $region47: #{moe_feed_forward.1} parent=39 // pred_region
          %v704 = vld [vmem:[%s474] sm:$0xff]
          %v705 = vld [vmem:[%s474 + $0x8] sm:$0xff]
          %v706 = vadd.f32 %v704, %v695
          %v707 = vadd.f32 %v705, %v696
          %708 = vst.msk [vmem:[%s474] sm:$0xff] %vm512, %v706
          %709 = vst.msk [vmem:[%s474 + $0x8] sm:$0xff] %vm512, %v707
        $region48: #{moe_feed_forward.1} parent=39 // pred_fallthru
          _
      $region40: #{moe_feed_forward.1} parent=35 // pred_fallthru
        _
      %s710 = smul.u32 2, %s32
      %p711 = scmp.lt.s32.totalorder %s710, 1
      %s712 = scalar_select %p711, %s710, 1
      %s713 = smul.addr %s712, 8
      %s714 = scalar_lea.vmem %s6, %s713
      // Predicated region
      $region49: #{moe_feed_forward.1} parent=35 // pred_check
        %p715 = pneg %p216
      $region50: #{moe_feed_forward.1} parent=35 // pred_check_branch
        %717 = sbr.rel (%p715) target = $region52
      $region51: #{moe_feed_forward.1} parent=35 // pred_region
        %s718 = smul.u32 2, %s32
      $region52: #{moe_feed_forward.1} parent=35 // pred_fallthru
        _
      // Predicated region
      $region53: #{moe_feed_forward.1} parent=35 // pred_check
        %p719 = pneg %p216
      $region54: #{moe_feed_forward.1} parent=35 // pred_check_branch
        %721 = sbr.rel (%p719) target = $region56
      $region55: #{moe_feed_forward.1} parent=35 // pred_region
        %s722 = smul.u32 2, %s32
        %p723 = scmp.lt.s32.totalorder %s722, 1
        %s724 = scalar_select %p723, %s722, 1
        %s725 = smul.addr %s724, 8
        %s726 = scalar_lea.vmem %s6, %s725
      $region56: #{moe_feed_forward.1} parent=35 // pred_fallthru
        _
    $region36: #{moe_feed_forward.1} parent=5 // pred_fallthru
      _
    %p727 = scmp.le.s32.totalorder 2, %s22
    // Predicated region
    $region57: #{moe_feed_forward.1} parent=5 // pred_check
      %p728 = pneg %p727
    $region58: #{moe_feed_forward.1} parent=5 // pred_check_branch
      %730 = sbr.rel (%p728) target = $region60
    $region59: #{moe_feed_forward.1} parent=5 // pred_region
      %s731 = ssub.s32 %s22, 2
    $region60: #{moe_feed_forward.1} parent=5 // pred_fallthru
      _
  $region6: #{moe_feed_forward.1} parent=0 // loop_footer
    %s26 = sadd.s32 1, %s22
  $region7: #{moe_feed_forward.1} parent=0 // loop_footer_branch
    %21 = sbr.rel target = $region3
  $region8: #{moe_feed_forward.1} parent=0 // loop_exit
    _

</llo_original>
